<compile_context>
chip_gen: v7x
topology: tpu7x:2x2x1
jax: 0.10.0
libtpu: 0.0.40
codegen_flags: <defaults>
</compile_context>

<pallas_src>
import jax
import jax.numpy as jnp
from jax.experimental import pallas as pl
from jax.experimental.pallas import tpu as pltpu


def _copy_kernel(x_ref, o_ref):
    # Identity pass-through of the flattened tile (the only "compute" a
    # flatten has). Whole tile load -> store (full-width, unmasked vst
    # because the last dim is a multiple of 128).
    o_ref[...] = x_ref[...]


def _sublane_multiple(dtype) -> int:
    # f32 -> 8, bf16/f16 -> 16, int8/fp8 -> 32 (sub-32-bit packs on sublanes).
    itemsize = jnp.dtype(dtype).itemsize
    return max(8, 32 // max(1, itemsize))


def _choose_copy_shape(total, rows, num_features):
    """Pick a lane-dense 2D slab (last dim a multiple of 128) for the copy."""
    if num_features % 128 == 0 and num_features >= 128:
        return rows, num_features
    for cols in (4096, 2048, 1024, 512, 256, 128):
        if total % cols == 0:
            return total // cols, cols
    # Fall back to the logical shape; Pallas masks partial lanes.
    return rows, num_features


def flatten_layer(x, num_features):
    """Pallas equivalent of FlattenLayer.forward: x.view(-1, num_features)."""
    total = 1
    for d in x.shape:
        total *= d
    assert total % num_features == 0, "num_features must divide total elements"
    rows = total // num_features

    dtype = x.dtype
    itemsize = jnp.dtype(dtype).itemsize
    sub = _sublane_multiple(dtype)

    copy_rows, copy_cols = _choose_copy_shape(total, rows, num_features)

    # Row-major reshape == torch .view (metadata-only glue, no data shuffle).
    x2d = jnp.reshape(x, (copy_rows, copy_cols))

    # --- Tile sizing ------------------------------------------------------
    # Budget ~24 MiB of VMEM for the pipeline (double-buffered input +
    # output ~= 4x the tile bytes): safe on v5e/v6e (128 MiB physical) and
    # on v7x (64 MiB physical, 32 MiB default scoped limit).
    vmem_budget = 24 << 20
    max_tile_bytes = vmem_budget // 4
    row_bytes = copy_cols * itemsize
    tile_rows = max(1, max_tile_bytes // row_bytes)
    if tile_rows >= sub:
        tile_rows = (tile_rows // sub) * sub  # sublane multiple for this dtype
    tile_rows = min(tile_rows, copy_rows)
    if copy_rows > 2 * sub and tile_rows >= copy_rows:
        # Keep at least 2 grid steps so the row axis can shard across v7x's
        # two TensorCores (no-op on single-core v5e/v6e).
        tile_rows = ((copy_rows + 1) // 2 + sub - 1) // sub * sub
        tile_rows = min(tile_rows, copy_rows)
    if tile_rows != copy_rows and tile_rows % sub != 0:
        # Block shape must be (8,128)-divisible or equal the full array dim.
        tile_rows = copy_rows if copy_rows <= sub else sub

    grid = (pl.cdiv(copy_rows, tile_rows),)

    out2d = pl.pallas_call(
        _copy_kernel,
        out_shape=jax.ShapeDtypeStruct((copy_rows, copy_cols), dtype),
        grid=grid,
        in_specs=[pl.BlockSpec((tile_rows, copy_cols), lambda i: (i, 0))],
        out_specs=pl.BlockSpec((tile_rows, copy_cols), lambda i: (i, 0)),
        # Alias the flattened input buffer as the output: no second HBM
        # allocation / footprint for the flattened tensor.
        input_output_aliases={0: 0},
        compiler_params=pltpu.CompilerParams(
            dimension_semantics=("parallel",),
            vmem_limit_bytes=32 << 20,
        ),
        cost_estimate=pl.CostEstimate(
            flops=0,
            transcendentals=0,
            bytes_accessed=2 * total * itemsize,
        ),
    )(x2d)

    # Final logical shape (metadata-only glue).
    return jnp.reshape(out2d, (rows, num_features))


if __name__ == "__main__":
    key = jax.random.PRNGKey(0)
    # NCHW input: batch=2, channels=4, spatial=16x16 -> num_features = 4*16*16
    B, C, H, W = 2, 4, 16, 16
    num_features = C * H * W
    x = jax.random.normal(key, (B, C, H, W), dtype=jnp.float32)

    # Reference (same semantics as torch .view) computed before the kernel.
    ref = jnp.reshape(x, (-1, num_features))
    jax.block_until_ready(ref)

    flatten_fn = jax.jit(flatten_layer, static_argnums=1)
    y = flatten_fn(x, num_features)
    jax.block_until_ready(y)

    assert y.shape == (B, num_features)
    assert bool(jnp.array_equal(y, ref))

    print("KERNEL_OK")
</pallas_src>

<mosaic_0001>
module attributes {stable_mosaic.version = 11 : i64} {
  func.func @_copy_kernel(%arg0: i32, %arg1: memref<2x1024xf32, #tpu.memory_space<vmem>>, %arg2: memref<2x1024xf32, #tpu.memory_space<vmem>>) attributes {dimension_semantics = [#tpu.dimension_semantics<parallel>], iteration_bounds = array<i64: 1>, scalar_prefetch = 0 : i64, scratch_operands = 0 : i64, tpu.core_type = #tpu.core_type<tc>, window_params = [{transform_indices = @transform_0, window_bounds = array<i64: 2, 1024>}, {transform_indices = @transform_1, window_bounds = array<i64: 2, 1024>}]} {
    %c0 = arith.constant 0 : index
    %c0_0 = arith.constant 0 : index
    %0 = vector.load %arg1[%c0, %c0_0] : memref<2x1024xf32, #tpu.memory_space<vmem>>, vector<2x1024xf32>
    %c0_1 = arith.constant 0 : index
    %c0_2 = arith.constant 0 : index
    %1 = vector.load %arg2[%c0_1, %c0_2] : memref<2x1024xf32, #tpu.memory_space<vmem>>, vector<2x1024xf32>
    tpu.vector_store %arg2[%c0_1, %c0_2], %0 {strides = array<i32>} : memref<2x1024xf32, #tpu.memory_space<vmem>>, vector<2x1024xf32>,
    return
  }
  func.func @transform_0(%arg0: i32) -> (i32, i32) {
    %c0_i32 = arith.constant 0 : i32
    %c0_i32_0 = arith.constant 0 : i32
    return %arg0, %c0_i32 : i32, i32
  }
  func.func @transform_1(%arg0: i32) -> (i32, i32) {
    %c0_i32 = arith.constant 0 : i32
    %c0_i32_0 = arith.constant 0 : i32
    return %arg0, %c0_i32 : i32, i32
  }
}

</mosaic_0001>

<llo_original>
// kernel: flatten_layer.1
$region0: #{flatten_layer.1}
  #allocation0 [shape = 'u32[]', space=smem, size = 0x4, offset = 0x4, fixed_abs, tag = 'smem constant byte address 0x4 - core index']
  #allocation1 [shape = 'u32[144,128]{1,0:T(1,128)}', space=vmem, size = 0x12000, scoped, tag = 'internal scratch']
  %s0 = inlined_call_operand.hbm [shape: f32[2,1024], index: 0, kind: input, shape index: {}, may-alias: {0,1}]
  %s1 = inlined_call_operand.hbm [shape: f32[2,1024], index: 1, kind: output, shape index: {}, may-alias: {0,1}]
  %s2 = sld [smem:[#allocation0]]
  $region18: #{flatten_layer.1} parent=0
    _
  %s4 = ssub.s32 1, %s2
  %s5 = scalar_select 0, %s4, %s2
  $region1: #{flatten_layer.1} parent=0
    #allocation2 [shape = 'u8[8192]{0}', space=vmem, size = 0x2000, scoped, tag = 'input window, operand 0, single buffered']
    #allocation3 [shape = 's32[1]{0}', space=sflag, size = 0x4, scoped, tag = 'scoped memory for flatten_layer.1']
    #allocation4 [shape = 's32[1]{0}', space=sflag, size = 0x4, scoped, tag = 'scoped memory for flatten_layer.1']
    #allocation5 [shape = 'u8[8192]{0}', space=vmem, size = 0x2000, scoped, tag = 'output window, operand 0, single buffered']
    %6 = vsyncpa [#allocation3], 0
    %7 = vsyncpa [#allocation4], 0
    // Predicated region
    $region2: #{flatten_layer.1} parent=1 // pred_check
      _
    $region3: #{flatten_layer.1} parent=1 // pred_check_branch
      %9 = sbr.rel (0) target = $region5
    $region4: #{flatten_layer.1} parent=1 // pred_region
      %s11 = ssub.s32 256, 256
      %12 = vsyncadd [#allocation3], %s11
      %s14 = sshll.u32 [#allocation2], 4
      %s15 = int_to_ptr.vmem [resolvable:$true] %s14
      %17 = dma.hbm_to_vmem [thread:$0]  %s0, 256, %s15, [#allocation3]
    $region5: #{flatten_layer.1} parent=1 // pred_fallthru
      _
    // Predicated region
    $region6: #{flatten_layer.1} parent=1 // pred_check
      _
    $region7: #{flatten_layer.1} parent=1 // pred_check_branch
      %19 = sbr.rel (0) target = $region9
    $region8: #{flatten_layer.1} parent=1 // pred_region
      %20 = dma.done [#allocation3], 256
    $region9: #{flatten_layer.1} parent=1 // pred_fallthru
      _
    %v21 = vld [vmem:[#allocation2] sm:$0xff]
    %v22 = vld [vmem:[#allocation2 + $0x8] sm:$0xff]
    %23 = vst [vmem:[#allocation5] sm:$0xff] %v21
    %24 = vst [vmem:[#allocation5 + $0x8] sm:$0xff] %v22
    // Predicated region
    $region10: #{flatten_layer.1} parent=1 // pred_check
      _
    $region11: #{flatten_layer.1} parent=1 // pred_check_branch
      %26 = sbr.rel (0) target = $region13
    $region12: #{flatten_layer.1} parent=1 // pred_region
      %s28 = ssub.s32 256, 256
      %29 = vsyncadd [#allocation4], %s28
      %s31 = sshll.u32 [#allocation5], 4
      %s32 = int_to_ptr.vmem [resolvable:$true] %s31
      %34 = dma.vmem_to_hbm [thread:$0]  %s32, 256, %s1, [#allocation4]
    $region13: #{flatten_layer.1} parent=1 // pred_fallthru
      _
    // Predicated region
    $region14: #{flatten_layer.1} parent=1 // pred_check
      _
    $region15: #{flatten_layer.1} parent=1 // pred_check_branch
      %36 = sbr.rel (0) target = $region17
    $region16: #{flatten_layer.1} parent=1 // pred_region
      %37 = dma.done [#allocation4], 256
    $region17: #{flatten_layer.1} parent=1 // pred_fallthru
      _
    %38 = vsyncpa [#allocation3], 1
    %39 = vsyncpa [#allocation4], 1

</llo_original>
